<compile_context>
chip_gen: v6e
topology: v6e:2x2x1
jax: 0.10.0
libtpu: 0.0.40
codegen_flags: <defaults>
</compile_context>

<pallas_src>
import jax
import jax.numpy as jnp
from jax.experimental import pallas as pl
from jax.experimental.pallas import tpu as pltpu


_TN = 8  # cutouts produced per grid step (full 8-sublane output blocks)


def _make_cutouts_kernel(xb_ref, facs_ref, noise_ref, out_ref):
    # xb_ref:    (K, CP)  image rearranged so reducing axis 0 (K = kh*kw pooling window)
    #                     yields the pooled image; CP = C*cut*cut is the lane-dense axis.
    # facs_ref:  (TN, 1)  per-cutout noise scales for this block of cutouts.
    # noise_ref: (TN, CP) gaussian noise for this block of cutouts.
    # out_ref:   (TN, CP) output block (lane-dense, unmasked stores).
    x = xb_ref[...]
    pooled = 0.5 * (jnp.mean(x, axis=0, keepdims=True)      # AdaptiveAvgPool2d
                    + jnp.max(x, axis=0, keepdims=True))    # AdaptiveMaxPool2d
    out_ref[...] = pooled + facs_ref[...] * noise_ref[...]


def _pad_up(v, m):
    return ((v + m - 1) // m) * m


def _block_vmem_bytes(shape, itemsize=4):
    *lead, sub, lane = shape
    n = 1
    for d in lead:
        n *= d
    return n * _pad_up(sub, 8) * _pad_up(lane, 128) * itemsize


def _vmem_cap_bytes():
    # Generation-aware cap: ~75% of physical VMEM (48 MiB on v7x, 96 MiB on v5e/v6e).
    try:
        return int(pltpu.get_tpu_info().vmem_capacity_bytes) * 3 // 4
    except Exception:
        return 48 * 1024 * 1024  # conservative fallback (fits v7x's 64 MiB physical)


def make_cutouts(x_nchw, *, cutn, cut_size, noise_fac, key):
    """Pallas implementation of MakeCutouts.forward (augs = identity).

    x_nchw: (1, C, H, W) float32.
    Returns (out_nchw (cutn, C, cut, cut), facs (cutn,), noise_nchw (cutn, C, cut, cut));
    facs / noise are returned only so the caller can run the reference check.
    """
    N, C, H, W = x_nchw.shape
    assert N == 1, "facs [cutn,1,1,1] broadcast in the reference module requires batch=1"
    # TODO(synk): exact-window adaptive pooling only; PyTorch handles uneven windows too.
    assert H % cut_size == 0 and W % cut_size == 0, "exact adaptive pooling only"
    kh, kw = H // cut_size, W // cut_size
    K = kh * kw
    P = cut_size * cut_size
    CP = C * P

    k_fac, k_noise = jax.random.split(key)
    facs = jax.random.uniform(k_fac, (cutn,), jnp.float32, 0.0, noise_fac)
    noise_nchw = jax.random.normal(k_noise, (cutn, C, cut_size, cut_size), jnp.float32)

    # Layout plumbing (XLA side): (1,C,H,W) -> (K, C*P) with
    #   xb[i*kw + j, c*P + r*cut + s] == x[c, r*kh + i, s*kw + j]
    # so reducing axis 0 performs the (kh,kw) pooling-window reduction and the trailing
    # axis is the lane-dense C*cut*cut output-pixel axis.
    x = x_nchw[0].astype(jnp.float32)                                  # (C, H, W)
    x5 = x.reshape(C, cut_size, kh, cut_size, kw)
    xb = jnp.transpose(x5, (2, 4, 0, 1, 3)).reshape(K, CP)

    facs2d = facs[:, None].astype(jnp.float32)                         # (cutn, 1)
    noise_flat = noise_nchw.reshape(cutn, CP)                          # (cutn, CP)

    tn = _TN
    cutn_pad = _pad_up(cutn, tn)
    if cutn_pad != cutn:
        pad = cutn_pad - cutn
        facs2d = jnp.pad(facs2d, ((0, pad), (0, 0)))
        noise_flat = jnp.pad(noise_flat, ((0, pad), (0, 0)))

    # VMEM budget: image block single-buffered (constant block index => fetched once);
    # facs / noise / out blocks double-buffered by the pipeline.
    xb_b = _block_vmem_bytes((K, CP))
    fac_b = _block_vmem_bytes((tn, 1))
    blk_b = _block_vmem_bytes((tn, CP))
    need = xb_b + 2 * fac_b + 2 * blk_b + 2 * blk_b
    cap = _vmem_cap_bytes()
    if need > cap:
        # TODO(synk): for huge images, tile the K axis with a second ("arbitrary") grid
        # dimension and accumulate the pooled result instead of failing.
        raise ValueError(f"image too large for single-block pooling: need {need} B VMEM, cap {cap} B")
    vmem_limit_bytes = int(min(max(2 * need, 32 * 1024 * 1024), cap))

    out_flat = pl.pallas_call(
        _make_cutouts_kernel,
        out_shape=jax.ShapeDtypeStruct((cutn_pad, CP), jnp.float32),
        grid=(cutn_pad // tn,),
        in_specs=[
            pl.BlockSpec((K, CP), lambda n: (0, 0)),     # whole image; constant index => one DMA
            pl.BlockSpec((tn, 1), lambda n: (n, 0)),     # per-cutout noise scales
            pl.BlockSpec((tn, CP), lambda n: (n, 0)),    # per-cutout gaussian noise
        ],
        out_specs=pl.BlockSpec((tn, CP), lambda n: (n, 0)),
        compiler_params=pltpu.CompilerParams(
            # No cross-step state (pooling recomputed per step) => cutout axis is parallel,
            # so v7x's two TensorCores can split the grid.
            dimension_semantics=("parallel",),
            vmem_limit_bytes=vmem_limit_bytes,
        ),
    )(xb, facs2d, noise_flat)

    out_nchw = out_flat[:cutn].reshape(cutn, C, cut_size, cut_size)
    return out_nchw, facs, noise_nchw


def _reference(x_nchw, cutn, cut_size, facs, noise_nchw):
    """Pure-JAX reference mirroring the PyTorch forward (augs = identity)."""
    N, C, H, W = x_nchw.shape
    kh, kw = H // cut_size, W // cut_size
    xr = x_nchw.reshape(N, C, cut_size, kh, cut_size, kw)
    pooled = (xr.mean(axis=(3, 5)) + xr.max(axis=(3, 5))) / 2.0   # (1, C, cut, cut)
    batch = jnp.concatenate([pooled] * cutn, axis=0)              # (cutn, C, cut, cut)
    return batch + facs[:, None, None, None] * noise_nchw


if __name__ == "__main__":
    key = jax.random.PRNGKey(0)
    k_x, k_rng = jax.random.split(key)

    # N must be 1 for the module's facs broadcast to be valid; cut_pow is unused by forward.
    N, C, H, W = 1, 4, 16, 16
    cut_size, cutn, noise_fac = 8, 16, 0.1

    x = jax.random.uniform(k_x, (N, C, H, W), jnp.float32)

    out, facs, noise = make_cutouts(
        x, cutn=cutn, cut_size=cut_size, noise_fac=noise_fac, key=k_rng)
    out = jax.block_until_ready(out)

    assert out.shape == (cutn * N, C, cut_size, cut_size)
    ref = _reference(x, cutn, cut_size, facs, noise)
    assert jnp.allclose(out, ref, atol=1e-5, rtol=1e-5), "mismatch vs reference"

    print("KERNEL_OK")
</pallas_src>

<mosaic_0001>
module attributes {stable_mosaic.version = 11 : i64} {
  func.func @_make_cutouts_kernel(%arg0: i32, %arg1: memref<4x256xf32, #tpu.memory_space<vmem>>, %arg2: memref<8x1xf32, #tpu.memory_space<vmem>>, %arg3: memref<8x256xf32, #tpu.memory_space<vmem>>, %arg4: memref<8x256xf32, #tpu.memory_space<vmem>>) attributes {dimension_semantics = [#tpu.dimension_semantics<parallel>], iteration_bounds = array<i64: 2>, scalar_prefetch = 0 : i64, scratch_operands = 0 : i64, tpu.core_type = #tpu.core_type<tc>, window_params = [{pipeline_mode = #tpu.pipeline_mode<synchronous>, transform_indices = @transform_0, window_bounds = array<i64: 4, 256>}, {transform_indices = @transform_1, window_bounds = array<i64: 8, 1>}, {transform_indices = @transform_2, window_bounds = array<i64: 8, 256>}, {transform_indices = @transform_3, window_bounds = array<i64: 8, 256>}]} {
    %c0 = arith.constant 0 : index
    %c0_0 = arith.constant 0 : index
    %0 = vector.load %arg1[%c0, %c0_0] : memref<4x256xf32, #tpu.memory_space<vmem>>, vector<4x256xf32>
    %cst = arith.constant dense<0.000000e+00> : vector<256xf32>
    %1 = vector.multi_reduction <add>, %0, %cst [0] : vector<4x256xf32> to vector<256xf32>
    %2 = vector.shape_cast %1 : vector<256xf32> to vector<1x256xf32>
    %cst_1 = arith.constant 4.000000e+00 : f32
    %3 = vector.broadcast %cst_1 : f32 to vector<1x256xf32>
    %4 = arith.divf %2, %3 : vector<1x256xf32>
    %cst_2 = arith.constant dense<0xFF800000> : vector<256xf32>
    %5 = vector.multi_reduction <maximumf>, %0, %cst_2 [0] : vector<4x256xf32> to vector<256xf32>
    %6 = vector.shape_cast %5 : vector<256xf32> to vector<1x256xf32>
    %7 = arith.addf %4, %6 : vector<1x256xf32>
    %cst_3 = arith.constant 5.000000e-01 : f32
    %8 = vector.broadcast %cst_3 : f32 to vector<1x256xf32>
    %9 = arith.mulf %8, %7 : vector<1x256xf32>
    %c0_4 = arith.constant 0 : index
    %c0_5 = arith.constant 0 : index
    %10 = vector.load %arg2[%c0_4, %c0_5] : memref<8x1xf32, #tpu.memory_space<vmem>>, vector<8x1xf32>
    %c0_6 = arith.constant 0 : index
    %c0_7 = arith.constant 0 : index
    %11 = vector.load %arg3[%c0_6, %c0_7] : memref<8x256xf32, #tpu.memory_space<vmem>>, vector<8x256xf32>
    %12 = vector.broadcast %10 : vector<8x1xf32> to vector<8x256xf32>
    %13 = arith.mulf %12, %11 : vector<8x256xf32>
    %14 = vector.broadcast %9 : vector<1x256xf32> to vector<8x256xf32>
    %15 = arith.addf %14, %13 : vector<8x256xf32>
    %c0_8 = arith.constant 0 : index
    %c0_9 = arith.constant 0 : index
    %16 = vector.load %arg4[%c0_8, %c0_9] : memref<8x256xf32, #tpu.memory_space<vmem>>, vector<8x256xf32>
    tpu.vector_store %arg4[%c0_8, %c0_9], %15 {strides = array<i32>} : memref<8x256xf32, #tpu.memory_space<vmem>>, vector<8x256xf32>,
    return
  }
  func.func @transform_0(%arg0: i32) -> (i32, i32) {
    %c0_i32 = arith.constant 0 : i32
    %c0_i32_0 = arith.constant 0 : i32
    %c0_i32_1 = arith.constant 0 : i32
    return %c0_i32, %c0_i32_0 : i32, i32
  }
  func.func @transform_1(%arg0: i32) -> (i32, i32) {
    %c0_i32 = arith.constant 0 : i32
    %c0_i32_0 = arith.constant 0 : i32
    return %arg0, %c0_i32 : i32, i32
  }
  func.func @transform_2(%arg0: i32) -> (i32, i32) {
    %c0_i32 = arith.constant 0 : i32
    %c0_i32_0 = arith.constant 0 : i32
    return %arg0, %c0_i32 : i32, i32
  }
  func.func @transform_3(%arg0: i32) -> (i32, i32) {
    %c0_i32 = arith.constant 0 : i32
    %c0_i32_0 = arith.constant 0 : i32
    return %arg0, %c0_i32 : i32, i32
  }
}

</mosaic_0001>

<llo_original>
// kernel: tpu_custom_call.1
$region0: #{tpu_custom_call.1}
  #allocation0 [shape = 'u32[]', space=smem, size = 0x4, offset = 0x4, fixed_abs, tag = 'smem constant byte address 0x4 - core index']
  #allocation1 [shape = 'u32[144,128]{1,0:T(1,128)}', space=vmem, size = 0x12000, scoped, tag = 'internal scratch']
  %s0 = inlined_call_operand.vmem [shape: f32[4,256], index: 0, kind: input, shape index: {}]
  %s1 = inlined_call_operand.vmem [shape: f32[16,1], index: 1, kind: input, shape index: {}]
  %s2 = inlined_call_operand.hbm [shape: f32[16,256], index: 2, kind: input, shape index: {}]
  %s3 = inlined_call_operand.hbm [shape: f32[16,256], index: 3, kind: output, shape index: {}]
  %s4 = sld [smem:[#allocation0]]
  $region49: #{tpu_custom_call.1} parent=0
    _
  %s6 = ssub.s32 1, %s4
  %s7 = scalar_select 0, %s6, %s4
  $region1: #{tpu_custom_call.1} parent=0
    #allocation2 [shape = 'u8[16384]{0}', space=vmem, size = 0x4000, scoped, tag = 'input window, operand 2']
    #allocation3 [shape = 's32[2]{0}', space=sflag, size = 0x8, scoped, tag = 'scoped memory for tpu_custom_call.1']
    #allocation4 [shape = 's32[2]{0}', space=sflag, size = 0x8, scoped, tag = 'scoped memory for tpu_custom_call.1']
    #allocation5 [shape = 'u8[16384]{0}', space=vmem, size = 0x4000, scoped, tag = 'output window, operand 0']
    %8 = vsyncpa [#allocation3], 0
    %s9 = scalar_lea.sflag [#allocation3], 1
    %10 = vsyncpa %s9, 0
    %11 = vsyncpa [#allocation4], 0
    %s12 = scalar_lea.sflag [#allocation4], 1
    %13 = vsyncpa %s12, 0
    loop: start=0, step=1, limit=4
    $region2: #{tpu_custom_call.1} parent=1 // loop_pre_header
      _
    $region3: #{tpu_custom_call.1} parent=1 // loop_header
      %s15 = sphi 0, %s19
      %p16 = scmp.ge.s32.totalorder %s15, 4
      %s23 = sphi 0, %s23
      %s25 = sphi 0, %s23
      %s26 = sphi 0, %s25
      %s40 = sphi 0, %s26
      %s46 = sphi 0, %s48
      %s49 = sphi 0, %s46
      %s50 = sphi 0, %s49
      %s66 = sphi 0, %s50
      %s72 = sphi 0, %s74
      %s75 = sphi 0, %s72
      %s76 = sphi 0, %s75
      %s92 = sphi 0, %s76
      %s98 = sphi 0, %s100
      %s101 = sphi 0, %s98
      %s102 = sphi 0, %s101
      %s118 = sphi 0, %s102
    $region4: #{tpu_custom_call.1} parent=1 // loop_header_branch
      %18 = sbr.rel (%p16) target = $region8
    $region5: #{tpu_custom_call.1} parent=1 // loop_body
      %s20 = ssub.s32 %s15, 1
      %s21 = ssub.s32 %s15, 2
      %s22 = sadd.s32 %s15, 1
      %s24 = sadd.s32 %s23, 1
      %p27 = scmp.eq.s32.totalorder %s15, 1
      %p28 = scmp.ne.s32.totalorder %s23, %s25
      %p29 = scmp.eq.s32.totalorder %s15, 0
      %p30 = por %p28, %p29
      %p31 = scmp.ne.s32.totalorder %s23, %s25
      %p32 = scmp.eq.s32.totalorder %s20, 1
      %p33 = por %p31, %p32
      %p34 = scmp.ne.s32.totalorder %s25, %s26
      %p35 = scmp.eq.s32.totalorder %s20, 0
      %p36 = por %p34, %p35
      %p37 = scmp.ne.s32.totalorder %s25, %s26
      %p38 = scmp.eq.s32.totalorder %s21, 1
      %p39 = por %p37, %p38
      %p41 = scmp.ne.s32.totalorder %s26, %s40
      %p42 = scmp.eq.s32.totalorder %s21, 0
      %p43 = por %p41, %p42
      %s44 = ssub.s32 %s15, %s22
      %p45 = scmp.eq.s32.totalorder %s44, 0
      %s47 = sadd.s32 %s46, 1
      %s48 = scalar_select %p45, %s46, %s47
      %p51 = pneg %p45
      %p52 = scmp.eq.s32.totalorder %s15, 1
      %p53 = por %p51, %p52
      %p54 = scmp.ne.s32.totalorder %s46, %s49
      %p55 = scmp.eq.s32.totalorder %s15, 0
      %p56 = por %p54, %p55
      %p57 = scmp.ne.s32.totalorder %s46, %s49
      %p58 = scmp.eq.s32.totalorder %s20, 1
      %p59 = por %p57, %p58
      %p60 = scmp.ne.s32.totalorder %s49, %s50
      %p61 = scmp.eq.s32.totalorder %s20, 0
      %p62 = por %p60, %p61
      %p63 = scmp.ne.s32.totalorder %s49, %s50
      %p64 = scmp.eq.s32.totalorder %s21, 1
      %p65 = por %p63, %p64
      %p67 = scmp.ne.s32.totalorder %s50, %s66
      %p68 = scmp.eq.s32.totalorder %s21, 0
      %p69 = por %p67, %p68
      %s70 = ssub.s32 %s15, %s22
      %p71 = scmp.eq.s32.totalorder %s70, 0
      %s73 = sadd.s32 %s72, 1
      %s74 = scalar_select %p71, %s72, %s73
      %p77 = pneg %p71
      %p78 = scmp.eq.s32.totalorder %s15, 1
      %p79 = por %p77, %p78
      %p80 = scmp.ne.s32.totalorder %s72, %s75
      %p81 = scmp.eq.s32.totalorder %s15, 0
      %p82 = por %p80, %p81
      %p83 = scmp.ne.s32.totalorder %s72, %s75
      %p84 = scmp.eq.s32.totalorder %s20, 1
      %p85 = por %p83, %p84
      %p86 = scmp.ne.s32.totalorder %s75, %s76
      %p87 = scmp.eq.s32.totalorder %s20, 0
      %p88 = por %p86, %p87
      %p89 = scmp.ne.s32.totalorder %s75, %s76
      %p90 = scmp.eq.s32.totalorder %s21, 1
      %p91 = por %p89, %p90
      %p93 = scmp.ne.s32.totalorder %s76, %s92
      %p94 = scmp.eq.s32.totalorder %s21, 0
      %p95 = por %p93, %p94
      %s96 = ssub.s32 %s15, %s22
      %p97 = scmp.eq.s32.totalorder %s96, 0
      %s99 = sadd.s32 %s98, 1
      %s100 = scalar_select %p97, %s98, %s99
      %p103 = pneg %p97
      %p104 = scmp.eq.s32.totalorder %s15, 1
      %p105 = por %p103, %p104
      %p106 = scmp.ne.s32.totalorder %s98, %s101
      %p107 = scmp.eq.s32.totalorder %s15, 0
      %p108 = por %p106, %p107
      %p109 = scmp.ne.s32.totalorder %s98, %s101
      %p110 = scmp.eq.s32.totalorder %s20, 1
      %p111 = por %p109, %p110
      %p112 = scmp.ne.s32.totalorder %s101, %s102
      %p113 = scmp.eq.s32.totalorder %s20, 0
      %p114 = por %p112, %p113
      %p115 = scmp.ne.s32.totalorder %s101, %s102
      %p116 = scmp.eq.s32.totalorder %s21, 1
      %p117 = por %p115, %p116
      %p119 = scmp.ne.s32.totalorder %s102, %s118
      %p120 = scmp.eq.s32.totalorder %s21, 0
      %p121 = por %p119, %p120
      %p122 = scmp.le.s32.totalorder 1, %s15
      %p123 = scmp.lt.s32.totalorder %s15, 3
      %p124 = pnand %p122, %p123
      %p125 = pneg %p124
      // Predicated region
      $region9: #{tpu_custom_call.1} parent=5 // pred_check
        _
      $region10: #{tpu_custom_call.1} parent=5 // pred_check_branch
        %127 = sbr.rel (%p124) target = $region12
      $region11: #{tpu_custom_call.1} parent=5 // pred_region
        %s128 = ssub.s32 %s15, 1
        // Predicated region
        $region13: #{tpu_custom_call.1} parent=11 // pred_check
          %p129 = pneg %p36
        $region14: #{tpu_custom_call.1} parent=11 // pred_check_branch
          %131 = sbr.rel (%p129) target = $region16
        $region15: #{tpu_custom_call.1} parent=11 // pred_region
          _
        $region16: #{tpu_custom_call.1} parent=11 // pred_fallthru
          _
      $region12: #{tpu_custom_call.1} parent=5 // pred_fallthru
        _
      %p132 = scmp.lt.s32.totalorder %s15, 2
      // Predicated region
      $region17: #{tpu_custom_call.1} parent=5 // pred_check
        %p133 = pneg %p132
      $region18: #{tpu_custom_call.1} parent=5 // pred_check_branch
        %135 = sbr.rel (%p133) target = $region20
      $region19: #{tpu_custom_call.1} parent=5 // pred_region
        // Predicated region
        $region21: #{tpu_custom_call.1} parent=19 // pred_check
          %p136 = pneg %p56
        $region22: #{tpu_custom_call.1} parent=19 // pred_check_branch
          %138 = sbr.rel (%p136) target = $region24
        $region23: #{tpu_custom_call.1} parent=19 // pred_region
          %p139 = scmp.lt.s32.totalorder %s15, 1
          %s140 = scalar_select %p139, %s15, 1
          %s141 = smul.addr %s140, 8
          %s142 = scalar_lea.vmem %s1, %s141
        $region24: #{tpu_custom_call.1} parent=19 // pred_fallthru
          _
        // Predicated region
        $region25: #{tpu_custom_call.1} parent=19 // pred_check
          %p143 = pneg %p82
        $region26: #{tpu_custom_call.1} parent=19 // pred_check_branch
          %145 = sbr.rel (%p143) target = $region28
        $region27: #{tpu_custom_call.1} parent=19 // pred_region
          %s146 = sand.u32 %s72, 1
          %s147 = scalar_lea.sflag [#allocation3], %s146
          %s148 = sand.u32 %s72, 1
          %s149 = smul.addr %s148, 16
          %s150 = scalar_lea.vmem [#allocation2], %s149
          %s152 = ssub.s32 256, 256
          %153 = vsyncadd %s147, %s152
          %s154 = smul.addr %s15, 2
          %s155 = smul.addr %s154, 128
          %s156 = scalar_lea.hbm %s2, %s155
          %s158 = sshll.u32 %s150, 4
          %s159 = int_to_ptr.vmem [resolvable:$true] %s158
          %161 = dma.hbm_to_vmem [thread:$0]  %s156, 256, %s159, %s147
        $region28: #{tpu_custom_call.1} parent=19 // pred_fallthru
          _
      $region20: #{tpu_custom_call.1} parent=5 // pred_fallthru
        _
      %p162 = scmp.le.s32.totalorder 1, %s15
      %p163 = scmp.lt.s32.totalorder %s15, 3
      %p164 = pnand %p162, %p163
      %p165 = pneg %p164
      // Predicated region
      $region29: #{tpu_custom_call.1} parent=5 // pred_check
        _
      $region30: #{tpu_custom_call.1} parent=5 // pred_check_branch
        %167 = sbr.rel (%p164) target = $region32
      $region31: #{tpu_custom_call.1} parent=5 // pred_region
        %s168 = ssub.s32 %s15, 1
        %s169 = sand.u32 %s75, 1
        %s170 = scalar_lea.sflag [#allocation3], %s169
        %s171 = sand.u32 %s75, 1
        %s172 = smul.addr %s171, 16
        %s173 = scalar_lea.vmem [#allocation2], %s172
        // Predicated region
        $region33: #{tpu_custom_call.1} parent=31 // pred_check
          %p174 = pneg %p88
        $region34: #{tpu_custom_call.1} parent=31 // pred_check_branch
          %176 = sbr.rel (%p174) target = $region36
        $region35: #{tpu_custom_call.1} parent=31 // pred_region
          %177 = dma.done %s170, 256
        $region36: #{tpu_custom_call.1} parent=31 // pred_fallthru
          _
        %p178 = pneg %p36
        %p179 = pneg %p33
        %p180 = scmp.lt.s32.totalorder %s20, 1
        %s181 = scalar_select %p180, %s20, 1
        %s182 = smul.addr %s181, 8
        %s183 = scalar_lea.vmem %s1, %s182
        %p184 = pneg %p62
        %p185 = pneg %p59
        %s186 = sand.u32 %s75, 1
        %s187 = scalar_lea.sflag [#allocation3], %s186
        %s188 = sand.u32 %s75, 1
        %s189 = smul.addr %s188, 16
        %s190 = scalar_lea.vmem [#allocation2], %s189
        %p191 = pneg %p88
        %p192 = pneg %p85
        %p193 = pneg %p114
        %p194 = pneg %p111
        %s195 = sand.u32 %s101, 1
        %s196 = scalar_lea.sflag [#allocation4], %s195
        %s197 = sand.u32 %s101, 1
        %s198 = smul.addr %s197, 16
        %s199 = scalar_lea.vmem [#allocation5], %s198
        %p200 = scmp.lt.s32.totalorder %s20, 1
        %s201 = scalar_select %p200, %s20, 1
        %s202 = smul.addr %s201, 8
        %s203 = scalar_lea.vmem %s1, %s202
        %v204 = vld [vmem:[%s0] sm:$0xff]
        %v206 = vcombine.high %v204, %v204
        %vm208 = vcmask 1043456
        %v209 = vsel %vm208, %v204, 0.0
        %v210 = vrot.slane %v209, 4
        %v211 = vadd.f32 %v209, %v210
        %v212 = vrot.slane %v211, 2
        %v213 = vadd.f32 %v211, %v212
        %v214 = vrot.slane %v213, 1
        %v215 = vadd.f32 %v213, %v214
        %v216 = vsel %vm208, %v206, 0.0
        %v217 = vrot.slane %v216, 4
        %v218 = vadd.f32 %v216, %v217
        %v219 = vrot.slane %v218, 2
        %v220 = vadd.f32 %v218, %v219
        %v221 = vrot.slane %v220, 1
        %v222 = vadd.f32 %v220, %v221
        %v223 = vrcp.pop 4.0
        %v224 = vmul.f32 %v215, %v223
        %v225 = vmul.f32 %v222, %v223
        %v226 = vsel %vm208, %v204, -inf
        %v227 = vrot.slane %v226, 4
        %v228 = vmax.f32 %v226, %v227
        %v229 = vrot.slane %v228, 2
        %v230 = vmax.f32 %v228, %v229
        %v231 = vrot.slane %v230, 1
        %v232 = vmax.f32 %v230, %v231
        %v233 = vsel %vm208, %v206, -inf
        %v234 = vrot.slane %v233, 4
        %v235 = vmax.f32 %v233, %v234
        %v236 = vrot.slane %v235, 2
        %v237 = vmax.f32 %v235, %v236
        %v238 = vrot.slane %v237, 1
        %v239 = vmax.f32 %v237, %v238
        %v240 = vadd.f32 %v224, %v232
        %v241 = vadd.f32 %v225, %v239
        %v242 = vmul.f32 %v240, 0.5
        %v243 = vmul.f32 %v241, 0.5
        %v244 = vld [vmem:[%s203] sm:$0xff]
        %v245 = vld [vmem:[%s173] sm:$0xff]
        %v246 = vld [vmem:[%s173 + $0x8] sm:$0xff]
        %248 = vset.pattern.permute.xlu0 0
        %249 = vperm.xlu0 %248, %v244
        %v250 = vpop.permute.xlu0 %249
        %v252 = vmul.f32 %v250, %v245
        %v253 = vmul.f32 %v250, %v246
        %v254 = vadd.f32 %v242, %v252
        %v255 = vadd.f32 %v243, %v253
        %256 = vst [vmem:[%s199] sm:$0xff] %v254
        %257 = vst [vmem:[%s199 + $0x8] sm:$0xff] %v255
        %s258 = sand.u32 %s101, 1
        %s259 = scalar_lea.sflag [#allocation4], %s258
        %s260 = sand.u32 %s101, 1
        %s261 = smul.addr %s260, 16
        %s262 = scalar_lea.vmem [#allocation5], %s261
        // Predicated region
        $region37: #{tpu_custom_call.1} parent=31 // pred_check
          %p263 = pneg %p111
        $region38: #{tpu_custom_call.1} parent=31 // pred_check_branch
          %265 = sbr.rel (%p263) target = $region40
        $region39: #{tpu_custom_call.1} parent=31 // pred_region
          %s267 = ssub.s32 256, 256
          %268 = vsyncadd %s259, %s267
          %s269 = smul.addr %s20, 2
          %s270 = smul.addr %s269, 128
          %s271 = scalar_lea.hbm %s3, %s270
          %s273 = sshll.u32 %s262, 4
          %s274 = int_to_ptr.vmem [resolvable:$true] %s273
          %276 = dma.vmem_to_hbm [thread:$0]  %s274, 256, %s271, %s259
        $region40: #{tpu_custom_call.1} parent=31 // pred_fallthru
          _
      $region32: #{tpu_custom_call.1} parent=5 // pred_fallthru
        _
      %p277 = scmp.le.s32.totalorder 2, %s15
      // Predicated region
      $region41: #{tpu_custom_call.1} parent=5 // pred_check
        %p278 = pneg %p277
      $region42: #{tpu_custom_call.1} parent=5 // pred_check_branch
        %280 = sbr.rel (%p278) target = $region44
      $region43: #{tpu_custom_call.1} parent=5 // pred_region
        %s281 = ssub.s32 %s15, 2
        // Predicated region
        $region45: #{tpu_custom_call.1} parent=43 // pred_check
          %p282 = pneg %p117
        $region46: #{tpu_custom_call.1} parent=43 // pred_check_branch
          %284 = sbr.rel (%p282) target = $region48
        $region47: #{tpu_custom_call.1} parent=43 // pred_region
          %s285 = sand.u32 %s102, 1
          %s286 = scalar_lea.sflag [#allocation4], %s285
          %s287 = sand.u32 %s102, 1
          %s288 = smul.addr %s287, 16
          %s289 = scalar_lea.vmem [#allocation5], %s288
          %290 = dma.done %s286, 256
        $region48: #{tpu_custom_call.1} parent=43 // pred_fallthru
          _
      $region44: #{tpu_custom_call.1} parent=5 // pred_fallthru
        _
    $region6: #{tpu_custom_call.1} parent=1 // loop_footer
      %s19 = sadd.s32 1, %s15
    $region7: #{tpu_custom_call.1} parent=1 // loop_footer_branch
      %14 = sbr.rel target = $region3
    $region8: #{tpu_custom_call.1} parent=1 // loop_exit
      _
    %291 = vsyncpa [#allocation3], 1
    %s292 = scalar_lea.sflag [#allocation3], 1
    %293 = vsyncpa %s292, 1
    %294 = vsyncpa [#allocation4], 1
    %s295 = scalar_lea.sflag [#allocation4], 1
    %296 = vsyncpa %s295, 1

</llo_original>
